<compile_context>
chip_gen: v6e
topology: v6e:2x2x1
jax: 0.10.0
libtpu: 0.0.40
codegen_flags: <defaults>
</compile_context>

<pallas_src>
import functools

import jax
import jax.numpy as jnp
from jax.experimental import pallas as pl
from jax.experimental.pallas import tpu as pltpu


def _round_up(n, m):
    return ((n + m - 1) // m) * m


def _center_loss_kernel(batch, num_classes, tile_rows,
                        x_ref, c_ref, loss_ref, acc_ref):
    i = pl.program_id(0)

    @pl.when(i == 0)
    def _init():
        acc_ref[...] = jnp.zeros_like(acc_ref)

    # Cast on load (VPU work hidden under the tile DMA); f32 accumulation.
    x = x_ref[...].astype(jnp.float32)   # (TB, D) feature rows
    c = c_ref[...].astype(jnp.float32)   # (TB, D) gathered centers[labels] rows
    diff = x - c
    d = jnp.sum(diff * diff, axis=1, keepdims=True)        # (TB, 1)
    d = jnp.clip(d, 1e-12, 1e12)

    # Mask rows that are padding (B was rounded up to a multiple of TB).
    row = i * tile_rows + jax.lax.broadcasted_iota(jnp.int32, d.shape, 0)
    d = jnp.where(row < batch, d, 0.0)

    acc_ref[...] += jnp.sum(d, axis=0, keepdims=True)       # (1, 1) partial

    @pl.when(i == pl.num_programs(0) - 1)
    def _finalize():
        # Clamp-after-mask parity with PyTorch: the B*(C-1) masked zeros each
        # clamp to 1e-12, contributing B*(C-1)*1e-12 / B = (C-1)*1e-12.
        masked_const = jnp.float32((num_classes - 1) * 1e-12)
        loss_ref[...] = acc_ref[...] / jnp.float32(batch) + masked_const


def center_loss(x, centers, labels):
    """Pallas implementation of CenterLoss.forward. Returns (loss, centers)."""
    B, D = x.shape
    C = centers.shape[0]
    labels_i32 = labels.astype(jnp.int32).reshape(B)

    # Pre-gather the labelled center rows (tiny XLA gather, clamped indices):
    # turns B non-contiguous (1, D) element DMAs into one contiguous stream.
    c_rows = jnp.take(centers, labels_i32, axis=0)           # (B, D)

    # Row-tile size: multiple of 16 (covers f32 and bf16 sublane packing),
    # as large as possible while one (TB, D) tile stays <= ~2 MiB so that
    # 2 inputs x 2 double buffers fit comfortably in every chip's scoped VMEM.
    itemsize = jnp.dtype(x.dtype).itemsize
    tb = 512
    while tb > 16 and tb * D * itemsize > (2 << 20):
        tb //= 2
    tb = min(tb, _round_up(B, 16))

    b_pad = _round_up(B, tb)
    if b_pad != B:
        pad = b_pad - B
        x = jnp.pad(x, ((0, pad), (0, 0)))
        c_rows = jnp.pad(c_rows, ((0, pad), (0, 0)))
    num_tiles = b_pad // tb

    kernel = functools.partial(_center_loss_kernel, B, C, tb)

    loss = pl.pallas_call(
        kernel,
        out_shape=jax.ShapeDtypeStruct((1, 1), jnp.float32),
        grid_spec=pltpu.PrefetchScalarGridSpec(
            num_scalar_prefetch=0,
            grid=(num_tiles,),
            in_specs=[
                pl.BlockSpec((tb, D), lambda i: (i, 0)),     # x tile
                pl.BlockSpec((tb, D), lambda i: (i, 0)),     # centers[labels] tile
            ],
            out_specs=pl.BlockSpec((1, 1), lambda i: (0, 0)),
            scratch_shapes=[pltpu.VMEM((1, 1), jnp.float32)],
        ),
        # The batch-tile axis carries the resident accumulator -> "arbitrary".
        compiler_params=pltpu.CompilerParams(
            dimension_semantics=("arbitrary",)),
    )(x, c_rows)

    return loss[0, 0], centers


def center_loss_ref(x, centers, labels):
    """Pure-JAX reference mirroring the PyTorch module exactly."""
    B = x.shape[0]
    C = centers.shape[0]
    distmat = (jnp.sum(x * x, axis=1, keepdims=True)
               + jnp.sum(centers * centers, axis=1)[None, :]
               - 2.0 * x @ centers.T)
    mask = (labels[:, None] == jnp.arange(C)[None, :]).astype(jnp.float32)
    dist = jnp.clip(distmat * mask, 1e-12, 1e12)
    return jnp.sum(dist) / B


if __name__ == "__main__":
    num_classes = 10
    feat_dim = 64
    batch = 40            # not a multiple of the row tile -> exercises masking

    key = jax.random.PRNGKey(0)
    k_centers, k_x, k_lab = jax.random.split(key, 3)

    # Deterministic parameter init (torch.randn-equivalent shape).
    centers = jax.random.normal(k_centers, (num_classes, feat_dim), jnp.float32)
    x = jax.random.normal(k_x, (batch, feat_dim), jnp.float32)
    labels = jax.random.randint(k_lab, (batch,), 0, num_classes, jnp.int32)

    loss, centers_out = center_loss(x, centers, labels)
    loss = jax.block_until_ready(loss)

    ref = jax.block_until_ready(center_loss_ref(x, centers, labels))
    assert jnp.allclose(loss, ref, rtol=1e-5, atol=1e-5), (loss, ref)
    assert centers_out.shape == (num_classes, feat_dim)

    print("KERNEL_OK")
</pallas_src>

<mosaic_0001>
module attributes {stable_mosaic.version = 11 : i64} {
  func.func @_center_loss_kernel(%arg0: i32, %arg1: memref<48x64xf32, #tpu.memory_space<vmem>>, %arg2: memref<48x64xf32, #tpu.memory_space<vmem>>, %arg3: memref<1x1xf32, #tpu.memory_space<vmem>>, %arg4: memref<1x1xf32, #tpu.memory_space<vmem>>) attributes {dimension_semantics = [#tpu.dimension_semantics<arbitrary>], iteration_bounds = array<i64: 1>, scalar_prefetch = 0 : i64, scratch_operands = 1 : i64, tpu.core_type = #tpu.core_type<tc>, window_params = [{transform_indices = @transform_0, window_bounds = array<i64: 48, 64>}, {transform_indices = @transform_1, window_bounds = array<i64: 48, 64>}, {pipeline_mode = #tpu.pipeline_mode<synchronous>, transform_indices = @transform_2, window_bounds = array<i64: 1, 1>}]} {
    %c0_i32 = arith.constant 0 : i32
    %0 = arith.cmpi eq, %arg0, %c0_i32 : i32
    %1 = arith.extui %0 : i1 to i32
    %c0_i32_0 = arith.constant 0 : i32
    %2 = arith.cmpi ne, %1, %c0_i32_0 : i32
    scf.if %2 {
      %cst_14 = arith.constant 0.000000e+00 : f32
      %29 = vector.broadcast %cst_14 : f32 to vector<1x1xf32>
      %c0_15 = arith.constant 0 : index
      %c0_16 = arith.constant 0 : index
      %30 = vector.load %arg4[%c0_15, %c0_16] : memref<1x1xf32, #tpu.memory_space<vmem>>, vector<1x1xf32>
      tpu.vector_store %arg4[%c0_15, %c0_16], %29 {strides = array<i32>} : memref<1x1xf32, #tpu.memory_space<vmem>>, vector<1x1xf32>,
    } else {
    }
    %c0 = arith.constant 0 : index
    %c0_1 = arith.constant 0 : index
    %3 = vector.load %arg1[%c0, %c0_1] : memref<48x64xf32, #tpu.memory_space<vmem>>, vector<48x64xf32>
    %c0_2 = arith.constant 0 : index
    %c0_3 = arith.constant 0 : index
    %4 = vector.load %arg2[%c0_2, %c0_3] : memref<48x64xf32, #tpu.memory_space<vmem>>, vector<48x64xf32>
    %5 = arith.subf %3, %4 : vector<48x64xf32>
    %6 = arith.mulf %5, %5 : vector<48x64xf32>
    %cst = arith.constant dense<0.000000e+00> : vector<48xf32>
    %7 = vector.multi_reduction <add>, %6, %cst [1] : vector<48x64xf32> to vector<48xf32>
    %8 = vector.shape_cast %7 : vector<48xf32> to vector<48x1xf32>
    %cst_4 = arith.constant 9.99999996E-13 : f32
    %cst_5 = arith.constant 9.99999995E+11 : f32
    %9 = vector.broadcast %cst_4 : f32 to vector<48x1xf32>
    %10 = arith.maximumf %9, %8 : vector<48x1xf32>
    %11 = vector.broadcast %cst_5 : f32 to vector<48x1xf32>
    %12 = arith.minimumf %11, %10 : vector<48x1xf32>
    %c48_i32 = arith.constant 48 : i32
    %13 = arith.muli %arg0, %c48_i32 : i32
    %14 = tpu.iota {dimensions = array<i32: 0>} : vector<48x1xi32>
    %15 = vector.broadcast %13 : i32 to vector<48x1xi32>
    %16 = arith.addi %15, %14 : vector<48x1xi32>
    %c40_i32 = arith.constant 40 : i32
    %17 = vector.broadcast %c40_i32 : i32 to vector<48x1xi32>
    %18 = arith.cmpi slt, %16, %17 : vector<48x1xi32>
    %cst_6 = arith.constant 0.000000e+00 : f32
    %19 = vector.broadcast %cst_6 : f32 to vector<48x1xf32>
    %20 = arith.select %18, %12, %19 : vector<48x1xi1>, vector<48x1xf32>
    %c0_7 = arith.constant 0 : index
    %c0_8 = arith.constant 0 : index
    %21 = vector.load %arg4[%c0_7, %c0_8] : memref<1x1xf32, #tpu.memory_space<vmem>>, vector<1x1xf32>
    %cst_9 = arith.constant dense<0.000000e+00> : vector<1xf32>
    %22 = vector.multi_reduction <add>, %20, %cst_9 [0] : vector<48x1xf32> to vector<1xf32>
    %23 = vector.shape_cast %22 : vector<1xf32> to vector<1x1xf32>
    %24 = arith.addf %21, %23 : vector<1x1xf32>
    %c0_10 = arith.constant 0 : index
    %c0_11 = arith.constant 0 : index
    %25 = vector.load %arg4[%c0_10, %c0_11] : memref<1x1xf32, #tpu.memory_space<vmem>>, vector<1x1xf32>
    tpu.vector_store %arg4[%c0_10, %c0_11], %24 {strides = array<i32>} : memref<1x1xf32, #tpu.memory_space<vmem>>, vector<1x1xf32>,
    %c0_i32_12 = arith.constant 0 : i32
    %26 = arith.cmpi eq, %arg0, %c0_i32_12 : i32
    %27 = arith.extui %26 : i1 to i32
    %c0_i32_13 = arith.constant 0 : i32
    %28 = arith.cmpi ne, %27, %c0_i32_13 : i32
    scf.if %28 {
      %c0_14 = arith.constant 0 : index
      %c0_15 = arith.constant 0 : index
      %29 = vector.load %arg4[%c0_14, %c0_15] : memref<1x1xf32, #tpu.memory_space<vmem>>, vector<1x1xf32>
      %cst_16 = arith.constant 4.000000e+01 : f32
      %30 = vector.broadcast %cst_16 : f32 to vector<1x1xf32>
      %31 = arith.divf %29, %30 : vector<1x1xf32>
      %cst_17 = arith.constant 9.000000e-12 : f32
      %32 = vector.broadcast %cst_17 : f32 to vector<1x1xf32>
      %33 = arith.addf %31, %32 : vector<1x1xf32>
      %c0_18 = arith.constant 0 : index
      %c0_19 = arith.constant 0 : index
      %34 = vector.load %arg3[%c0_18, %c0_19] : memref<1x1xf32, #tpu.memory_space<vmem>>, vector<1x1xf32>
      tpu.vector_store %arg3[%c0_18, %c0_19], %33 {strides = array<i32>} : memref<1x1xf32, #tpu.memory_space<vmem>>, vector<1x1xf32>,
    } else {
    }
    return
  }
  func.func @transform_0(%arg0: i32) -> (i32, i32) {
    %c0_i32 = arith.constant 0 : i32
    %c0_i32_0 = arith.constant 0 : i32
    return %arg0, %c0_i32 : i32, i32
  }
  func.func @transform_1(%arg0: i32) -> (i32, i32) {
    %c0_i32 = arith.constant 0 : i32
    %c0_i32_0 = arith.constant 0 : i32
    return %arg0, %c0_i32 : i32, i32
  }
  func.func @transform_2(%arg0: i32) -> (i32, i32) {
    %c0_i32 = arith.constant 0 : i32
    %c0_i32_0 = arith.constant 0 : i32
    %c0_i32_1 = arith.constant 0 : i32
    return %c0_i32, %c0_i32_0 : i32, i32
  }
}

</mosaic_0001>

<llo_original>
// kernel: tpu_custom_call.1
$region0: #{tpu_custom_call.1}
  #allocation0 [shape = 'u32[]', space=smem, size = 0x4, offset = 0x4, fixed_abs, tag = 'smem constant byte address 0x4 - core index']
  #allocation1 [shape = 'u32[144,128]{1,0:T(1,128)}', space=vmem, size = 0x12000, scoped, tag = 'internal scratch']
  #allocation2 [shape = 'f32[1,1]{1,0:T(1,128)}', space=vmem, size = 0x200, scoped, tag = 'scratch operand']
  %s0 = inlined_call_operand.hbm [shape: f32[48,64], index: 0, kind: input, shape index: {}]
  %s1 = inlined_call_operand.hbm [shape: f32[48,64], index: 1, kind: input, shape index: {}]
  %s2 = inlined_call_operand.hbm [shape: f32[1,1], index: 2, kind: output, shape index: {}]
  %s3 = sld [smem:[#allocation0]]
  $region34: #{tpu_custom_call.1} parent=0
    _
  %s5 = ssub.s32 1, %s3
  %s6 = scalar_select 0, %s5, %s3
  $region1: #{tpu_custom_call.1} parent=0
    #allocation3 [shape = 'u8[24576]{0}', space=vmem, size = 0x6000, scoped, tag = 'input window, operand 0, single buffered']
    #allocation4 [shape = 's32[1]{0}', space=sflag, size = 0x4, scoped, tag = 'scoped memory for tpu_custom_call.1']
    #allocation5 [shape = 's32[1]{0}', space=sflag, size = 0x4, scoped, tag = 'scoped memory for tpu_custom_call.1']
    #allocation6 [shape = 'u8[24576]{0}', space=vmem, size = 0x6000, scoped, tag = 'input window, operand 1, single buffered']
    #allocation7 [shape = 's32[1]{0}', space=sflag, size = 0x4, scoped, tag = 'scoped memory for tpu_custom_call.1']
    #allocation8 [shape = 'u8[512]{0}', space=vmem, size = 0x400, scoped, tag = 'output window, operand 0, single buffered']
    %7 = vsyncpa [#allocation4], 0
    %8 = vsyncpa [#allocation7], 0
    %9 = vsyncpa [#allocation5], 0
    // Predicated region
    $region2: #{tpu_custom_call.1} parent=1 // pred_check
      _
    $region3: #{tpu_custom_call.1} parent=1 // pred_check_branch
      %11 = sbr.rel (0) target = $region5
    $region4: #{tpu_custom_call.1} parent=1 // pred_region
      %s13 = ssub.s32 768, 768
      %14 = vsyncadd [#allocation4], %s13
      %s15 = sshll.u32 [#allocation3], 4
      %s16 = int_to_ptr.vmem [resolvable:$true] %s15
      %21 = dma.hbm_to_vmem [thread:$0]  %s0, 768, %s16, [#allocation4], 128, 128, 8
    $region5: #{tpu_custom_call.1} parent=1 // pred_fallthru
      _
    // Predicated region
    $region6: #{tpu_custom_call.1} parent=1 // pred_check
      _
    $region7: #{tpu_custom_call.1} parent=1 // pred_check_branch
      %23 = sbr.rel (0) target = $region9
    $region8: #{tpu_custom_call.1} parent=1 // pred_region
      %s25 = ssub.s32 768, 768
      %26 = vsyncadd [#allocation7], %s25
      %s27 = sshll.u32 [#allocation6], 4
      %s28 = int_to_ptr.vmem [resolvable:$true] %s27
      %33 = dma.hbm_to_vmem [thread:$0]  %s1, 768, %s28, [#allocation7], 128, 128, 8
    $region9: #{tpu_custom_call.1} parent=1 // pred_fallthru
      _
    // Predicated region
    $region10: #{tpu_custom_call.1} parent=1 // pred_check
      _
    $region11: #{tpu_custom_call.1} parent=1 // pred_check_branch
      %35 = sbr.rel (0) target = $region13
    $region12: #{tpu_custom_call.1} parent=1 // pred_region
      %36 = dma.done [#allocation4], 768
    $region13: #{tpu_custom_call.1} parent=1 // pred_fallthru
      _
    // Predicated region
    $region14: #{tpu_custom_call.1} parent=1 // pred_check
      _
    $region15: #{tpu_custom_call.1} parent=1 // pred_check_branch
      %38 = sbr.rel (0) target = $region17
    $region16: #{tpu_custom_call.1} parent=1 // pred_region
      %39 = dma.done [#allocation7], 768
    $region17: #{tpu_custom_call.1} parent=1 // pred_fallthru
      _
    %p40 = scmp.eq.s32.totalorder 0, 0
    // Predicated region
    $region18: #{tpu_custom_call.1} parent=1 // pred_check
      %p41 = pneg %p40
    $region19: #{tpu_custom_call.1} parent=1 // pred_check_branch
      %43 = sbr.rel (%p41) target = $region21
    $region20: #{tpu_custom_call.1} parent=1 // pred_region
      %vm44 = vcmask 0
      %45 = vst.msk [vmem:[#allocation2] sm:$0x1] %vm44, 0.0
    $region21: #{tpu_custom_call.1} parent=1 // pred_fallthru
      _
    %v46 = vld [vmem:[#allocation3] sm:$0xff]
    %v47 = vld [vmem:[#allocation3 + $0x8] sm:$0xff]
    %v48 = vld [vmem:[#allocation3 + $0x10] sm:$0xff]
    %v49 = vld [vmem:[#allocation3 + $0x18] sm:$0xff]
    %v50 = vld [vmem:[#allocation3 + $0x20] sm:$0xff]
    %v51 = vld [vmem:[#allocation3 + $0x28] sm:$0xff]
    %v52 = vld [vmem:[#allocation6] sm:$0xff]
    %v53 = vld [vmem:[#allocation6 + $0x8] sm:$0xff]
    %v54 = vld [vmem:[#allocation6 + $0x10] sm:$0xff]
    %v55 = vld [vmem:[#allocation6 + $0x18] sm:$0xff]
    %v56 = vld [vmem:[#allocation6 + $0x20] sm:$0xff]
    %v57 = vld [vmem:[#allocation6 + $0x28] sm:$0xff]
    %v58 = vsub.f32 %v46, %v52
    %v59 = vsub.f32 %v47, %v53
    %v60 = vsub.f32 %v48, %v54
    %v61 = vsub.f32 %v49, %v55
    %v62 = vsub.f32 %v50, %v56
    %v63 = vsub.f32 %v51, %v57
    %v64 = vmul.f32 %v58, %v58
    %v65 = vmul.f32 %v59, %v59
    %v66 = vmul.f32 %v60, %v60
    %v67 = vmul.f32 %v61, %v61
    %v68 = vmul.f32 %v62, %v62
    %v69 = vmul.f32 %v63, %v63
    %vm70 = vcmask 523264
    %v71 = vsel %vm70, %v64, 0.0
    %72 = vadd.xlane.f32.xlu0 %v71
    %v73 = vpop.xlane.xlu0 %72
    %v74 = vsel %vm70, %v65, 0.0
    %75 = vadd.xlane.f32.xlu0 %v74
    %v76 = vpop.xlane.xlu0 %75
    %v77 = vsel %vm70, %v66, 0.0
    %78 = vadd.xlane.f32.xlu0 %v77
    %v79 = vpop.xlane.xlu0 %78
    %v80 = vsel %vm70, %v67, 0.0
    %81 = vadd.xlane.f32.xlu0 %v80
    %v82 = vpop.xlane.xlu0 %81
    %v83 = vsel %vm70, %v68, 0.0
    %84 = vadd.xlane.f32.xlu0 %v83
    %v85 = vpop.xlane.xlu0 %84
    %v86 = vsel %vm70, %v69, 0.0
    %87 = vadd.xlane.f32.xlu0 %v86
    %v88 = vpop.xlane.xlu0 %87
    %v89 = vmax.f32 %v73, 1e-12
    %v90 = vmax.f32 %v76, 1e-12
    %v91 = vmax.f32 %v79, 1e-12
    %v92 = vmax.f32 %v82, 1e-12
    %v93 = vmax.f32 %v85, 1e-12
    %v94 = vmax.f32 %v88, 1e-12
    %v95 = vmin.f32 %v89, 1e+12
    %v96 = vmin.f32 %v90, 1e+12
    %v97 = vmin.f32 %v91, 1e+12
    %v98 = vmin.f32 %v92, 1e+12
    %v99 = vmin.f32 %v93, 1e+12
    %v100 = vmin.f32 %v94, 1e+12
    %s101 = smul.u32 0, 48
    %v102 = vlaneseq
    %v103 = vshrl.u32 %v102, 7
    %v104 = vadd.s32 %v103, 8
    %v105 = vadd.s32 %v103, 16
    %v106 = vadd.s32 %v103, 24
    %v107 = vadd.s32 %v103, 32
    %v108 = vadd.s32 %v103, 40
    %v109 = vstv %s101
    %v110 = vadd.s32 %v109, %v103
    %v111 = vadd.s32 %v109, %v104
    %v112 = vadd.s32 %v109, %v105
    %v113 = vadd.s32 %v109, %v106
    %v114 = vadd.s32 %v109, %v107
    %v115 = vadd.s32 %v109, %v108
    %vm116 = vcmp.lt.s32.totalorder %v110, 40
    %vm117 = vcmp.lt.s32.totalorder %v111, 40
    %vm118 = vcmp.lt.s32.totalorder %v112, 40
    %vm119 = vcmp.lt.s32.totalorder %v113, 40
    %vm120 = vcmp.lt.s32.totalorder %v114, 40
    %vm121 = vcmp.lt.s32.totalorder %v115, 40
    %v122 = vsel %vm116, %v95, 0.0
    %v123 = vsel %vm117, %v96, 0.0
    %v124 = vsel %vm118, %v97, 0.0
    %v125 = vsel %vm119, %v98, 0.0
    %v126 = vsel %vm120, %v99, 0.0
    %v127 = vsel %vm121, %v100, 0.0
    %v128 = vld [vmem:[#allocation2] sm:$0x1]
    %v129 = vadd.f32 %v122, %v123
    %v130 = vadd.f32 %v129, %v124
    %v131 = vadd.f32 %v130, %v125
    %v132 = vadd.f32 %v131, %v126
    %v133 = vadd.f32 %v132, %v127
    %v134 = vrot.slane %v133, 4
    %v135 = vadd.f32 %v133, %v134
    %v136 = vrot.slane %v135, 2
    %v137 = vadd.f32 %v135, %v136
    %v138 = vrot.slane %v137, 1
    %v139 = vadd.f32 %v137, %v138
    %v140 = vadd.f32 %v128, %v139
    %vm141 = vcmask 0
    %142 = vst.msk [vmem:[#allocation2] sm:$0x1] %vm141, %v140
    // Predicated region
    $region22: #{tpu_custom_call.1} parent=1 // pred_check
      %p143 = pneg %p40
    $region23: #{tpu_custom_call.1} parent=1 // pred_check_branch
      %145 = sbr.rel (%p143) target = $region25
    $region24: #{tpu_custom_call.1} parent=1 // pred_region
      %v146 = vld [vmem:[#allocation2] sm:$0x1]
      %v147 = vrcp.pop 40.0
      %v148 = vmul.f32 %v146, %v147
      %v149 = vadd.f32 %v148, 9e-12
      %150 = vst.msk [vmem:[#allocation8] sm:$0x1] %vm141, %v149
    $region25: #{tpu_custom_call.1} parent=1 // pred_fallthru
      _
    // Predicated region
    $region26: #{tpu_custom_call.1} parent=1 // pred_check
      _
    $region27: #{tpu_custom_call.1} parent=1 // pred_check_branch
      %152 = sbr.rel (0) target = $region29
    $region28: #{tpu_custom_call.1} parent=1 // pred_region
      %s154 = ssub.s32 16, 16
      %155 = vsyncadd [#allocation5], %s154
      %s157 = sshll.u32 [#allocation8], 4
      %s158 = int_to_ptr.vmem [resolvable:$true] %s157
      %160 = dma.vmem_to_hbm [thread:$0]  %s158, 16, %s2, [#allocation5]
    $region29: #{tpu_custom_call.1} parent=1 // pred_fallthru
      _
    // Predicated region
    $region30: #{tpu_custom_call.1} parent=1 // pred_check
      _
    $region31: #{tpu_custom_call.1} parent=1 // pred_check_branch
      %162 = sbr.rel (0) target = $region33
    $region32: #{tpu_custom_call.1} parent=1 // pred_region
      %163 = dma.done [#allocation5], 16
    $region33: #{tpu_custom_call.1} parent=1 // pred_fallthru
      _
    %164 = vsyncpa [#allocation4], 1
    %165 = vsyncpa [#allocation7], 1
    %166 = vsyncpa [#allocation5], 1

</llo_original>
